<compile_context>
chip_gen: v7x
topology: tpu7x:2x2x1
jax: 0.10.0
libtpu: 0.0.40
codegen_flags: <defaults>
</compile_context>

<pallas_src>
import math

import jax
import jax.numpy as jnp
from jax import lax
from jax.experimental import pallas as pl
from jax.experimental.pallas import tpu as pltpu

_MiB = 1024 * 1024


# ---------------------------------------------------------------------------
# Kernels
# ---------------------------------------------------------------------------

def _fused_attn_kernel(x_ref, wq_ref, bq_ref, wkv_ref, bkv_ref,
                       att_ref, out_ref, k_scr, v_scr):
    # x_ref:    (1, S, Dm)   full sequence for this batch element
    # wq_ref:   (Dm, Dh)     Q weights with 1/sqrt(Dh) folded in
    # bq_ref:   (1, Dh)      Q bias with 1/sqrt(Dh) folded in
    # wkv_ref:  (Dm, 2*Dh)   fused [wk | wv]
    # bkv_ref:  (1, 2*Dh)    fused [bk | bv]
    # att_ref:  (1, TQ, S)   attention probabilities for this query tile
    # out_ref:  (1, TQ, Dh)
    # k_scr/v_scr: (S, Dh)   VMEM scratch, resident across query tiles
    qi = pl.program_id(1)
    Dh = out_ref.shape[2]
    TQ = att_ref.shape[1]

    # K/V projection once per batch element; reused by every query tile.
    @pl.when(qi == 0)
    def _():
        kv = jnp.dot(x_ref[0], wkv_ref[...],
                     preferred_element_type=jnp.float32)            # (S, 2*Dh)
        kv = (kv + bkv_ref[...].astype(jnp.float32)).astype(k_scr.dtype)
        k_scr[...] = kv[:, :Dh]
        v_scr[...] = kv[:, Dh:]

    # Project only this tile's Q (no Q scratch needed).
    q_start = pl.multiple_of(qi * TQ, TQ)
    x_tile = x_ref[0, pl.ds(q_start, TQ), :]                        # (TQ, Dm)
    q = jnp.dot(x_tile, wq_ref[...], preferred_element_type=jnp.float32)
    q = (q + bq_ref[...].astype(jnp.float32)).astype(x_tile.dtype)  # pre-scaled

    # scores = q @ k^T without materializing a transpose (contract last dims).
    scores = lax.dot_general(q, k_scr[...], (((1,), (1,)), ((), ())),
                             preferred_element_type=jnp.float32)    # (TQ, S)

    # Numerically-stable softmax over the key axis (exact reciprocal so the
    # materialized att matches the reference softmax tightly).
    m = jnp.max(scores, axis=-1, keepdims=True)
    p = jnp.exp(scores - m)
    denom = jnp.sum(p, axis=-1, keepdims=True)
    att = p * pl.reciprocal(denom, approx=False)                    # (TQ, S)

    out = jnp.dot(att.astype(v_scr.dtype), v_scr[...],
                  preferred_element_type=jnp.float32)               # (TQ, Dh)

    att_ref[0] = att.astype(att_ref.dtype)
    out_ref[0] = out.astype(out_ref.dtype)


def _attn_only_kernel(q_ref, k_ref, v_ref, att_ref, out_ref):
    # Hoisted-projection variant: q/k/v arrive pre-projected (q pre-scaled),
    # so there is no cross-step scratch and both grid axes are "parallel"
    # (lets v7x's two TensorCores split work even when B == 1).
    scores = lax.dot_general(q_ref[0], k_ref[0], (((1,), (1,)), ((), ())),
                             preferred_element_type=jnp.float32)    # (TQ, S)
    m = jnp.max(scores, axis=-1, keepdims=True)
    p = jnp.exp(scores - m)
    denom = jnp.sum(p, axis=-1, keepdims=True)
    att = p * pl.reciprocal(denom, approx=False)
    out = jnp.dot(att.astype(v_ref.dtype), v_ref[0],
                  preferred_element_type=jnp.float32)
    att_ref[0] = att.astype(att_ref.dtype)
    out_ref[0] = out.astype(out_ref.dtype)


# ---------------------------------------------------------------------------
# VMEM accounting & tile selection
# ---------------------------------------------------------------------------

def _vmem_capacity_bytes():
    try:
        return int(pltpu.get_tpu_info().vmem_capacity_bytes)
    except Exception:
        return 64 * _MiB  # conservative default (v7x per-TC); v5e/v6e have 128 MiB


def _fused_vmem_bytes(S, Dm, Dh, tq, itm):
    f32 = 4
    io = (S * Dm * itm                        # x block        (single-buffered)
          + (Dm * Dh + Dh) * itm              # wq, bq         (single-buffered)
          + (Dm * 2 * Dh + 2 * Dh) * itm      # wkv, bkv       (single-buffered)
          + 2 * tq * S * itm                  # att out block  (double-buffered)
          + 2 * tq * Dh * itm)                # out block      (double-buffered)
    scratch = 2 * S * Dh * itm                # resident K / V
    temps = (S * 2 * Dh * f32                 # (S, 2*Dh) f32 kv at qi == 0
             + 3 * tq * S * f32               # scores / p / att in f32
             + 2 * tq * Dh * f32)             # q / out f32 intermediates
    return io + scratch + temps


def _hoisted_vmem_bytes(S, Dh, tq, itm):
    f32 = 4
    io = (2 * tq * Dh * itm                   # q block
          + 2 * S * Dh * itm                  # k block
          + 2 * S * Dh * itm                  # v block
          + 2 * tq * S * itm                  # att out block
          + 2 * tq * Dh * itm)                # out block
    temps = 3 * tq * S * f32 + 2 * tq * Dh * f32
    return io + temps


def _q_tile_candidates(S):
    if S % 8 != 0:
        return [S]
    cands = {S}
    for t in (4096, 2048, 1024, 512, 256, 128, 64, 32, 16, 8):
        if t <= S and S % t == 0:
            cands.add(t)
    return sorted(cands, reverse=True)


def _pick_q_tile(S, fit_bytes_fn, budget):
    cands = _q_tile_candidates(S)
    for tq in cands:               # largest tile that fits the budget
        if fit_bytes_fn(tq) <= budget:
            return tq
    return cands[-1]               # nothing fits: take the smallest anyway


def _vmem_limit_bytes(need, cap):
    hi = max(cap - 2 * _MiB, 16 * _MiB)
    limit = min(hi, max(need + 4 * _MiB, 32 * _MiB))
    return int(max(limit, need))   # never cap below the computed need


def _single_buffered_spec(shape, index_map):
    """Grid-invariant input: one VMEM buffer instead of two."""
    if hasattr(pl, "Buffered"):
        return pl.BlockSpec(shape, index_map, pipeline_mode=pl.Buffered(1))
    return pl.BlockSpec(shape, index_map)


# ---------------------------------------------------------------------------
# Wrapper
# ---------------------------------------------------------------------------

def self_attention(x, wq, bq, wk, bk, wv, bv, *, q_tile=None, projection="auto"):
    """x: (B, S, Dm); wq/wk/wv: (Dm, Dh) (transposed vs torch); bq/bk/bv: (Dh,).

    Returns (att, out) matching SelfAttention.forward(x).
    projection: "auto" | "fused" (in-kernel QKV) | "hoisted" (XLA QKV, attention-only kernel).
    """
    B, S, Dm = x.shape
    Dh = wq.shape[1]
    itm = jnp.dtype(x.dtype).itemsize
    scale = 1.0 / math.sqrt(Dh)

    cap = _vmem_capacity_bytes()
    budget = int(cap * 0.70)       # headroom for Mosaic internal scratch / padding

    cands = _q_tile_candidates(S)
    if projection == "auto":
        fused_min_need = _fused_vmem_bytes(S, Dm, Dh, cands[-1], itm)
        # B < 2: batch axis can't feed both v7x TensorCores -> hoist so the
        # query-tile axis can be "parallel". Also hoist if fused can't fit.
        projection = "hoisted" if (B < 2 or fused_min_need > budget) else "fused"

    if projection == "fused":
        if q_tile is None:
            q_tile = _pick_q_tile(S, lambda t: _fused_vmem_bytes(S, Dm, Dh, t, itm), budget)
        assert S % q_tile == 0, "sequence length must be a multiple of the query tile"
        nq = S // q_tile

        # Fold 1/sqrt(Dh) into the Q projection; fuse K/V weights into one matmul.
        wq_s = (wq * scale).astype(x.dtype)
        bq_s = (bq * scale).reshape(1, Dh).astype(x.dtype)
        wkv = jnp.concatenate([wk, wv], axis=1).astype(x.dtype)
        bkv = jnp.concatenate([bk, bv]).reshape(1, 2 * Dh).astype(x.dtype)

        need = _fused_vmem_bytes(S, Dm, Dh, q_tile, itm)
        vmem_limit = _vmem_limit_bytes(need, cap)

        cost = pl.CostEstimate(
            flops=2 * B * S * Dm * 3 * Dh + 4 * B * S * S * Dh,
            transcendentals=B * S * S,
            bytes_accessed=(x.size + wq_s.size + bq_s.size + wkv.size + bkv.size
                            + B * S * S + B * S * Dh) * itm,
        )

        att, out = pl.pallas_call(
            _fused_attn_kernel,
            out_shape=(
                jax.ShapeDtypeStruct((B, S, S), x.dtype),
                jax.ShapeDtypeStruct((B, S, Dh), x.dtype),
            ),
            grid_spec=pltpu.PrefetchScalarGridSpec(
                num_scalar_prefetch=0,
                grid=(B, nq),
                in_specs=[
                    _single_buffered_spec((1, S, Dm), lambda b, i: (b, 0, 0)),   # x
                    _single_buffered_spec((Dm, Dh), lambda b, i: (0, 0)),        # wq (scaled)
                    _single_buffered_spec((1, Dh), lambda b, i: (0, 0)),         # bq (scaled)
                    _single_buffered_spec((Dm, 2 * Dh), lambda b, i: (0, 0)),    # [wk|wv]
                    _single_buffered_spec((1, 2 * Dh), lambda b, i: (0, 0)),     # [bk|bv]
                ],
                out_specs=[
                    pl.BlockSpec((1, q_tile, S), lambda b, i: (b, i, 0)),        # att (lane-dense)
                    pl.BlockSpec((1, q_tile, Dh), lambda b, i: (b, i, 0)),       # out
                ],
                scratch_shapes=[
                    pltpu.VMEM((S, Dh), x.dtype),   # K (resident per batch element)
                    pltpu.VMEM((S, Dh), x.dtype),   # V
                ],
            ),
            compiler_params=pltpu.CompilerParams(
                # query-tile axis reuses scratch written at qi == 0 -> sequential.
                dimension_semantics=("parallel", "arbitrary"),
                vmem_limit_bytes=vmem_limit,
            ),
            cost_estimate=cost,
        )(x, wq_s, bq_s, wkv, bkv)
        return att, out

    # ---- hoisted path: QKV projection as plain XLA, attention-only kernel ----
    if q_tile is None:
        q_tile = _pick_q_tile(S, lambda t: _hoisted_vmem_bytes(S, Dh, t, itm), budget)
    assert S % q_tile == 0, "sequence length must be a multiple of the query tile"
    nq = S // q_tile

    q = ((jnp.einsum("bsd,dh->bsh", x, wq) + bq) * scale).astype(x.dtype)
    k = (jnp.einsum("bsd,dh->bsh", x, wk) + bk).astype(x.dtype)
    v = (jnp.einsum("bsd,dh->bsh", x, wv) + bv).astype(x.dtype)

    need = _hoisted_vmem_bytes(S, Dh, q_tile, itm)
    vmem_limit = _vmem_limit_bytes(need, cap)

    cost = pl.CostEstimate(
        flops=4 * B * S * S * Dh,
        transcendentals=B * S * S,
        bytes_accessed=(3 * B * S * Dh + B * S * S + B * S * Dh) * itm,
    )

    att, out = pl.pallas_call(
        _attn_only_kernel,
        out_shape=(
            jax.ShapeDtypeStruct((B, S, S), x.dtype),
            jax.ShapeDtypeStruct((B, S, Dh), x.dtype),
        ),
        grid_spec=pltpu.PrefetchScalarGridSpec(
            num_scalar_prefetch=0,
            grid=(B, nq),
            in_specs=[
                pl.BlockSpec((1, q_tile, Dh), lambda b, i: (b, i, 0)),   # q tile
                pl.BlockSpec((1, S, Dh), lambda b, i: (b, 0, 0)),        # k (full seq)
                pl.BlockSpec((1, S, Dh), lambda b, i: (b, 0, 0)),        # v (full seq)
            ],
            out_specs=[
                pl.BlockSpec((1, q_tile, S), lambda b, i: (b, i, 0)),    # att (lane-dense)
                pl.BlockSpec((1, q_tile, Dh), lambda b, i: (b, i, 0)),   # out
            ],
        ),
        compiler_params=pltpu.CompilerParams(
            # No cross-step dependency -> both axes can split across TCs.
            dimension_semantics=("parallel", "parallel"),
            vmem_limit_bytes=vmem_limit,
        ),
        cost_estimate=cost,
    )(q, k, v)
    return att, out


# ---------------------------------------------------------------------------
# Reference & test harness
# ---------------------------------------------------------------------------

def _reference(x, wq, bq, wk, bk, wv, bv):
    q = jnp.einsum("bsd,dh->bsh", x, wq) + bq
    k = jnp.einsum("bsd,dh->bsh", x, wk) + bk
    v = jnp.einsum("bsd,dh->bsh", x, wv) + bv
    scores = jnp.einsum("bij,bkj->bik", q, k) / jnp.sqrt(
        jnp.array(wq.shape[1], jnp.float32))
    att = jax.nn.softmax(scores, axis=-1)
    out = jnp.einsum("bij,bjk->bik", att, v)
    return att, out


def _make_inputs(key, B, S, Dm, Dh, dtype=jnp.float32):
    kx, kq, kbq, kk, kbk, kv, kbv = jax.random.split(key, 7)
    bound = 1.0 / math.sqrt(Dm)  # nn.Linear init: U(-1/sqrt(in), 1/sqrt(in))
    x = jax.random.normal(kx, (B, S, Dm), dtype)
    wq = jax.random.uniform(kq, (Dm, Dh), dtype, -bound, bound)
    bq = jax.random.uniform(kbq, (Dh,), dtype, -bound, bound)
    wk = jax.random.uniform(kk, (Dm, Dh), dtype, -bound, bound)
    bk = jax.random.uniform(kbk, (Dh,), dtype, -bound, bound)
    wv = jax.random.uniform(kv, (Dm, Dh), dtype, -bound, bound)
    bv = jax.random.uniform(kbv, (Dh,), dtype, -bound, bound)
    return x, wq, bq, wk, bk, wv, bv


if __name__ == "__main__":
    key = jax.random.PRNGKey(0)
    k1, k2, k3 = jax.random.split(key, 3)

    # 1) Small toy config (single query tile, fused in-kernel QKV projection).
    args = _make_inputs(k1, B=2, S=8, Dm=32, Dh=16)
    att, out = self_attention(*args)
    jax.block_until_ready((att, out))
    att_r, out_r = _reference(*args)
    assert jnp.allclose(att, att_r, atol=2e-5, rtol=2e-5), "att mismatch (small)"
    assert jnp.allclose(out, out_r, atol=2e-5, rtol=2e-5), "out mismatch (small)"

    # 2) Query-tiled fused path: 2 batches x 2 query tiles of 128 (lane-dense att).
    args = _make_inputs(k2, B=2, S=256, Dm=128, Dh=128)
    att, out = self_attention(*args, q_tile=128, projection="fused")
    jax.block_until_ready((att, out))
    att_r, out_r = _reference(*args)
    assert jnp.allclose(att, att_r, atol=1e-4, rtol=1e-3), "att mismatch (fused tiled)"
    assert jnp.allclose(out, out_r, atol=1e-4, rtol=1e-3), "out mismatch (fused tiled)"

    # 3) Hoisted-projection path (B=1 -> both grid axes parallel, v7x megacore).
    args = _make_inputs(k3, B=1, S=256, Dm=128, Dh=128)
    att, out = self_attention(*args, q_tile=128, projection="hoisted")
    jax.block_until_ready((att, out))
    att_r, out_r = _reference(*args)
    assert jnp.allclose(att, att_r, atol=1e-4, rtol=1e-3), "att mismatch (hoisted)"
    assert jnp.allclose(out, out_r, atol=1e-4, rtol=1e-3), "out mismatch (hoisted)"

    print("KERNEL_OK")
</pallas_src>

<mosaic_0001>
module attributes {stable_mosaic.version = 11 : i64} {
  func.func @_fused_attn_kernel(%arg0: i32, %arg1: i32, %arg2: memref<1x8x32xf32, #tpu.memory_space<vmem>>, %arg3: memref<32x16xf32, #tpu.memory_space<vmem>>, %arg4: memref<1x16xf32, #tpu.memory_space<vmem>>, %arg5: memref<32x32xf32, #tpu.memory_space<vmem>>, %arg6: memref<1x32xf32, #tpu.memory_space<vmem>>, %arg7: memref<1x8x8xf32, #tpu.memory_space<vmem>>, %arg8: memref<1x8x16xf32, #tpu.memory_space<vmem>>, %arg9: memref<8x16xf32, #tpu.memory_space<vmem>>, %arg10: memref<8x16xf32, #tpu.memory_space<vmem>>) attributes {dimension_semantics = [#tpu.dimension_semantics<parallel>, #tpu.dimension_semantics<arbitrary>], iteration_bounds = array<i64: 2, 1>, scalar_prefetch = 0 : i64, scratch_operands = 2 : i64, tpu.core_type = #tpu.core_type<tc>, window_params = [{pipeline_mode = #tpu.pipeline_mode<synchronous>, transform_indices = @transform_0, window_bounds = array<i64: 1, 8, 32>}, {pipeline_mode = #tpu.pipeline_mode<synchronous>, transform_indices = @transform_1, window_bounds = array<i64: 32, 16>}, {pipeline_mode = #tpu.pipeline_mode<synchronous>, transform_indices = @transform_2, window_bounds = array<i64: 1, 16>}, {pipeline_mode = #tpu.pipeline_mode<synchronous>, transform_indices = @transform_3, window_bounds = array<i64: 32, 32>}, {pipeline_mode = #tpu.pipeline_mode<synchronous>, transform_indices = @transform_4, window_bounds = array<i64: 1, 32>}, {transform_indices = @transform_5, window_bounds = array<i64: 1, 8, 8>}, {transform_indices = @transform_6, window_bounds = array<i64: 1, 8, 16>}]} {
    %c0_i32 = arith.constant 0 : i32
    %0 = arith.cmpi eq, %arg1, %c0_i32 : i32
    %1 = arith.extui %0 : i1 to i32
    %c0_i32_0 = arith.constant 0 : i32
    %2 = arith.cmpi ne, %1, %c0_i32_0 : i32
    scf.if %2 {
      %c0_20 = arith.constant 0 : index
      %c0_21 = arith.constant 0 : index
      %c0_22 = arith.constant 0 : index
      %33 = vector.load %arg2[%c0_20, %c0_21, %c0_22] : memref<1x8x32xf32, #tpu.memory_space<vmem>>, vector<1x8x32xf32>
      %34 = vector.shape_cast %33 : vector<1x8x32xf32> to vector<8x32xf32>
      %c0_23 = arith.constant 0 : index
      %c0_24 = arith.constant 0 : index
      %35 = vector.load %arg5[%c0_23, %c0_24] : memref<32x32xf32, #tpu.memory_space<vmem>>, vector<32x32xf32>
      %cst_25 = arith.constant dense<0.000000e+00> : vector<8x32xf32>
      %36 = tpu.matmul %34, %35, %cst_25 {dimension_numbers = #tpu.dot_dimension_numbers<[1], [0], [0], [1], [0, 0, 1, 1], [], []>} : vector<8x32xf32>, vector<32x32xf32>, vector<8x32xf32> -> vector<8x32xf32>
      %c0_26 = arith.constant 0 : index
      %c0_27 = arith.constant 0 : index
      %37 = vector.load %arg6[%c0_26, %c0_27] : memref<1x32xf32, #tpu.memory_space<vmem>>, vector<1x32xf32>
      %38 = vector.broadcast %37 : vector<1x32xf32> to vector<8x32xf32>
      %39 = arith.addf %36, %38 : vector<8x32xf32>
      %40 = vector.extract_strided_slice %39 {offsets = [0, 0], sizes = [8, 16], strides = [1, 1]} : vector<8x32xf32> to vector<8x16xf32>
      %c0_28 = arith.constant 0 : index
      %c0_29 = arith.constant 0 : index
      %41 = vector.load %arg9[%c0_28, %c0_29] : memref<8x16xf32, #tpu.memory_space<vmem>>, vector<8x16xf32>
      tpu.vector_store %arg9[%c0_28, %c0_29], %40 {strides = array<i32>} : memref<8x16xf32, #tpu.memory_space<vmem>>, vector<8x16xf32>,
      %42 = vector.extract_strided_slice %39 {offsets = [0, 16], sizes = [8, 16], strides = [1, 1]} : vector<8x32xf32> to vector<8x16xf32>
      %c0_30 = arith.constant 0 : index
      %c0_31 = arith.constant 0 : index
      %43 = vector.load %arg10[%c0_30, %c0_31] : memref<8x16xf32, #tpu.memory_space<vmem>>, vector<8x16xf32>
      tpu.vector_store %arg10[%c0_30, %c0_31], %42 {strides = array<i32>} : memref<8x16xf32, #tpu.memory_space<vmem>>, vector<8x16xf32>,
    } else {
    }
    %c8_i32 = arith.constant 8 : i32
    %3 = arith.muli %arg1, %c8_i32 : i32
    %4 = tpu.assume_multiple %3, 8 : i32
    %c0 = arith.constant 0 : index
    %5 = arith.index_cast %4 : i32 to index
    %c0_1 = arith.constant 0 : index
    %6 = vector.load %arg2[%c0, %5, %c0_1] : memref<1x8x32xf32, #tpu.memory_space<vmem>>, vector<1x8x32xf32>
    %7 = vector.shape_cast %6 : vector<1x8x32xf32> to vector<8x32xf32>
    %c0_2 = arith.constant 0 : index
    %c0_3 = arith.constant 0 : index
    %8 = vector.load %arg3[%c0_2, %c0_3] : memref<32x16xf32, #tpu.memory_space<vmem>>, vector<32x16xf32>
    %cst = arith.constant dense<0.000000e+00> : vector<8x16xf32>
    %9 = tpu.matmul %7, %8, %cst {dimension_numbers = #tpu.dot_dimension_numbers<[1], [0], [0], [1], [0, 0, 1, 1], [], []>} : vector<8x32xf32>, vector<32x16xf32>, vector<8x16xf32> -> vector<8x16xf32>
    %c0_4 = arith.constant 0 : index
    %c0_5 = arith.constant 0 : index
    %10 = vector.load %arg4[%c0_4, %c0_5] : memref<1x16xf32, #tpu.memory_space<vmem>>, vector<1x16xf32>
    %11 = vector.broadcast %10 : vector<1x16xf32> to vector<8x16xf32>
    %12 = arith.addf %9, %11 : vector<8x16xf32>
    %c0_6 = arith.constant 0 : index
    %c0_7 = arith.constant 0 : index
    %13 = vector.load %arg9[%c0_6, %c0_7] : memref<8x16xf32, #tpu.memory_space<vmem>>, vector<8x16xf32>
    %cst_8 = arith.constant dense<0.000000e+00> : vector<8x8xf32>
    %14 = tpu.matmul %12, %13, %cst_8 {dimension_numbers = #tpu.dot_dimension_numbers<[1], [1], [0], [0], [0, 0, 1, 0], [], []>} : vector<8x16xf32>, vector<8x16xf32>, vector<8x8xf32> -> vector<8x8xf32>
    %cst_9 = arith.constant dense<0xFF800000> : vector<8xf32>
    %15 = vector.multi_reduction <maximumf>, %14, %cst_9 [1] : vector<8x8xf32> to vector<8xf32>
    %16 = vector.shape_cast %15 : vector<8xf32> to vector<8x1xf32>
    %17 = vector.broadcast %16 : vector<8x1xf32> to vector<8x8xf32>
    %18 = arith.subf %14, %17 : vector<8x8xf32>
    %19 = math.exp %18 : vector<8x8xf32>
    %cst_10 = arith.constant dense<0.000000e+00> : vector<8xf32>
    %20 = vector.multi_reduction <add>, %19, %cst_10 [1] : vector<8x8xf32> to vector<8xf32>
    %21 = vector.shape_cast %20 : vector<8xf32> to vector<8x1xf32>
    %22 = tpu.reciprocal %21 : vector<8x1xf32> -> vector<8x1xf32>
    %23 = vector.broadcast %22 : vector<8x1xf32> to vector<8x8xf32>
    %24 = arith.mulf %19, %23 : vector<8x8xf32>
    %c0_11 = arith.constant 0 : index
    %c0_12 = arith.constant 0 : index
    %25 = vector.load %arg10[%c0_11, %c0_12] : memref<8x16xf32, #tpu.memory_space<vmem>>, vector<8x16xf32>
    %cst_13 = arith.constant dense<0.000000e+00> : vector<8x16xf32>
    %26 = tpu.matmul %24, %25, %cst_13 {dimension_numbers = #tpu.dot_dimension_numbers<[1], [0], [0], [1], [0, 0, 1, 1], [], []>} : vector<8x8xf32>, vector<8x16xf32>, vector<8x16xf32> -> vector<8x16xf32>
    %c0_14 = arith.constant 0 : index
    %c0_15 = arith.constant 0 : index
    %c0_16 = arith.constant 0 : index
    %27 = vector.load %arg7[%c0_14, %c0_15, %c0_16] : memref<1x8x8xf32, #tpu.memory_space<vmem>>, vector<1x8x8xf32>
    %28 = vector.shape_cast %27 : vector<1x8x8xf32> to vector<8x8xf32>
    %29 = vector.shape_cast %24 : vector<8x8xf32> to vector<1x8x8xf32>
    tpu.vector_store %arg7[%c0_14, %c0_15, %c0_16], %29 {strides = array<i32>} : memref<1x8x8xf32, #tpu.memory_space<vmem>>, vector<1x8x8xf32>,
    %c0_17 = arith.constant 0 : index
    %c0_18 = arith.constant 0 : index
    %c0_19 = arith.constant 0 : index
    %30 = vector.load %arg8[%c0_17, %c0_18, %c0_19] : memref<1x8x16xf32, #tpu.memory_space<vmem>>, vector<1x8x16xf32>
    %31 = vector.shape_cast %30 : vector<1x8x16xf32> to vector<8x16xf32>
    %32 = vector.shape_cast %26 : vector<8x16xf32> to vector<1x8x16xf32>
    tpu.vector_store %arg8[%c0_17, %c0_18, %c0_19], %32 {strides = array<i32>} : memref<1x8x16xf32, #tpu.memory_space<vmem>>, vector<1x8x16xf32>,
    return
  }
  func.func @transform_0(%arg0: i32, %arg1: i32) -> (i32, i32, i32) {
    %c0_i32 = arith.constant 0 : i32
    %c0_i32_0 = arith.constant 0 : i32
    %c0_i32_1 = arith.constant 0 : i32
    return %arg0, %c0_i32, %c0_i32_0 : i32, i32, i32
  }
  func.func @transform_1(%arg0: i32, %arg1: i32) -> (i32, i32) {
    %c0_i32 = arith.constant 0 : i32
    %c0_i32_0 = arith.constant 0 : i32
    %c0_i32_1 = arith.constant 0 : i32
    return %c0_i32, %c0_i32_0 : i32, i32
  }
  func.func @transform_2(%arg0: i32, %arg1: i32) -> (i32, i32) {
    %c0_i32 = arith.constant 0 : i32
    %c0_i32_0 = arith.constant 0 : i32
    %c0_i32_1 = arith.constant 0 : i32
    return %c0_i32, %c0_i32_0 : i32, i32
  }
  func.func @transform_3(%arg0: i32, %arg1: i32) -> (i32, i32) {
    %c0_i32 = arith.constant 0 : i32
    %c0_i32_0 = arith.constant 0 : i32
    %c0_i32_1 = arith.constant 0 : i32
    return %c0_i32, %c0_i32_0 : i32, i32
  }
  func.func @transform_4(%arg0: i32, %arg1: i32) -> (i32, i32) {
    %c0_i32 = arith.constant 0 : i32
    %c0_i32_0 = arith.constant 0 : i32
    %c0_i32_1 = arith.constant 0 : i32
    return %c0_i32, %c0_i32_0 : i32, i32
  }
  func.func @transform_5(%arg0: i32, %arg1: i32) -> (i32, i32, i32) {
    %c0_i32 = arith.constant 0 : i32
    %c0_i32_0 = arith.constant 0 : i32
    return %arg0, %arg1, %c0_i32 : i32, i32, i32
  }
  func.func @transform_6(%arg0: i32, %arg1: i32) -> (i32, i32, i32) {
    %c0_i32 = arith.constant 0 : i32
    %c0_i32_0 = arith.constant 0 : i32
    return %arg0, %arg1, %c0_i32 : i32, i32, i32
  }
}

</mosaic_0001>

<llo_original>
// kernel: tpu_custom_call.1
$region0: #{tpu_custom_call.1}
  #allocation0 [shape = 'u32[]', space=smem, size = 0x4, offset = 0x4, fixed_abs, tag = 'smem constant byte address 0x4 - core index']
  #allocation1 [shape = 'u32[144,128]{1,0:T(1,128)}', space=vmem, size = 0x12000, scoped, tag = 'internal scratch']
  #allocation2 [shape = 'f32[8,16]{1,0:T(8,128)}', space=vmem, size = 0x1000, scoped, tag = 'scratch operand']
  #allocation3 [shape = 'f32[8,16]{1,0:T(8,128)}', space=vmem, size = 0x1000, scoped, tag = 'scratch operand']
  %s0 = inlined_call_operand.vmem [shape: f32[2,8,32], index: 0, kind: input, shape index: {}]
  %s1 = inlined_call_operand.vmem [shape: f32[32,16], index: 1, kind: input, shape index: {}]
  %s2 = inlined_call_operand.vmem [shape: f32[1,16], index: 2, kind: input, shape index: {}]
  %s3 = inlined_call_operand.vmem [shape: f32[32,32], index: 3, kind: input, shape index: {}]
  %s4 = inlined_call_operand.vmem [shape: f32[1,32], index: 4, kind: input, shape index: {}]
  %s5 = inlined_call_operand.hbm [shape: f32[2,8,8], index: 5, kind: output, shape index: {0}]
  %s6 = inlined_call_operand.hbm [shape: f32[2,8,16], index: 6, kind: output, shape index: {1}]
  %7 = xla_tuple %s5, %s6
  %s8 = sld [smem:[#allocation0]]
  $region65: #{tpu_custom_call.1} parent=0
    _
  %s10 = ssub.s32 1, %s8
  %s11 = scalar_select 0, %s10, %s8
  $region1: #{tpu_custom_call.1} parent=0
    #allocation4 [shape = 'u8[8192]{0}', space=vmem, size = 0x2000, scoped, tag = 'output window, operand 0']
    #allocation5 [shape = 's32[2]{0}', space=sflag, size = 0x8, scoped, tag = 'scoped memory for tpu_custom_call.1']
    #allocation6 [shape = 'u8[8192]{0}', space=vmem, size = 0x2000, scoped, tag = 'output window, operand 1']
    #allocation7 [shape = 's32[2]{0}', space=sflag, size = 0x8, scoped, tag = 'scoped memory for tpu_custom_call.1']
    %12 = vsyncpa [#allocation5], 0
    %s13 = scalar_lea.sflag [#allocation5], 1
    %14 = vsyncpa %s13, 0
    %15 = vsyncpa [#allocation7], 0
    %s16 = scalar_lea.sflag [#allocation7], 1
    %17 = vsyncpa %s16, 0
    loop: start=0, step=1, limit=4
    $region2: #{tpu_custom_call.1} parent=1 // loop_pre_header
      _
    $region3: #{tpu_custom_call.1} parent=1 // loop_header
      %s19 = sphi 0, %s23
      %p20 = scmp.ge.s32.totalorder %s19, 4
      %s26 = sphi 0, %s38
      %s27 = sphi 0, %s34
      %s28 = sphi 0, %s26
      %s29 = sphi 0, %s27
      %s30 = sphi 0, %s28
      %s31 = sphi 0, %s29
      %s41 = sphi 0, %s43
      %s44 = sphi 0, %s41
      %s45 = sphi 0, %s44
      %s61 = sphi 0, %s45
      %s65 = sphi 0, %s65
      %s67 = sphi 0, %s65
      %s68 = sphi 0, %s67
      %s82 = sphi 0, %s68
      %s86 = sphi 0, %s86
      %s88 = sphi 0, %s86
      %s89 = sphi 0, %s88
      %s103 = sphi 0, %s89
      %s107 = sphi 0, %s107
      %s109 = sphi 0, %s107
      %s110 = sphi 0, %s109
      %s124 = sphi 0, %s110
      %s128 = sphi 0, %s128
      %s130 = sphi 0, %s128
      %s131 = sphi 0, %s130
      %s145 = sphi 0, %s131
      %s153 = sphi 0, %s155
      %s156 = sphi 0, %s153
      %s157 = sphi 0, %s156
      %s173 = sphi 0, %s157
      %s181 = sphi 0, %s183
      %s184 = sphi 0, %s181
      %s185 = sphi 0, %s184
      %s201 = sphi 0, %s185
    $region4: #{tpu_custom_call.1} parent=1 // loop_header_branch
      %22 = sbr.rel (%p20) target = $region8
    $region5: #{tpu_custom_call.1} parent=1 // loop_body
      %s24 = ssub.s32 %s19, 1
      %s25 = ssub.s32 %s19, 2
      %s32 = sadd.s32 1, %s27
      %p33 = scmp.ge.s32.totalorder %s32, 1
      %s34 = scalar_select %p33, 0, %s32
      %s35 = sadd.s32 1, %s26
      %s36 = scalar_select %p33, %s35, %s26
      %p37 = scmp.ge.s32.totalorder %s36, 2
      %s38 = scalar_select %p37, 0, %s36
      %s39 = ssub.s32 %s26, %s38
      %p40 = scmp.eq.s32.totalorder %s39, 0
      %s42 = sadd.s32 %s41, 1
      %s43 = scalar_select %p40, %s41, %s42
      %p46 = pneg %p40
      %p47 = scmp.eq.s32.totalorder %s19, 1
      %p48 = por %p46, %p47
      %p49 = scmp.ne.s32.totalorder %s41, %s44
      %p50 = scmp.eq.s32.totalorder %s19, 0
      %p51 = por %p49, %p50
      %p52 = scmp.ne.s32.totalorder %s41, %s44
      %p53 = scmp.eq.s32.totalorder %s24, 1
      %p54 = por %p52, %p53
      %p55 = scmp.ne.s32.totalorder %s44, %s45
      %p56 = scmp.eq.s32.totalorder %s24, 0
      %p57 = por %p55, %p56
      %p58 = scmp.ne.s32.totalorder %s44, %s45
      %p59 = scmp.eq.s32.totalorder %s25, 1
      %p60 = por %p58, %p59
      %p62 = scmp.ne.s32.totalorder %s45, %s61
      %p63 = scmp.eq.s32.totalorder %s25, 0
      %p64 = por %p62, %p63
      %s66 = sadd.s32 %s65, 1
      %p69 = scmp.eq.s32.totalorder %s19, 1
      %p70 = scmp.ne.s32.totalorder %s65, %s67
      %p71 = scmp.eq.s32.totalorder %s19, 0
      %p72 = por %p70, %p71
      %p73 = scmp.ne.s32.totalorder %s65, %s67
      %p74 = scmp.eq.s32.totalorder %s24, 1
      %p75 = por %p73, %p74
      %p76 = scmp.ne.s32.totalorder %s67, %s68
      %p77 = scmp.eq.s32.totalorder %s24, 0
      %p78 = por %p76, %p77
      %p79 = scmp.ne.s32.totalorder %s67, %s68
      %p80 = scmp.eq.s32.totalorder %s25, 1
      %p81 = por %p79, %p80
      %p83 = scmp.ne.s32.totalorder %s68, %s82
      %p84 = scmp.eq.s32.totalorder %s25, 0
      %p85 = por %p83, %p84
      %s87 = sadd.s32 %s86, 1
      %p90 = scmp.eq.s32.totalorder %s19, 1
      %p91 = scmp.ne.s32.totalorder %s86, %s88
      %p92 = scmp.eq.s32.totalorder %s19, 0
      %p93 = por %p91, %p92
      %p94 = scmp.ne.s32.totalorder %s86, %s88
      %p95 = scmp.eq.s32.totalorder %s24, 1
      %p96 = por %p94, %p95
      %p97 = scmp.ne.s32.totalorder %s88, %s89
      %p98 = scmp.eq.s32.totalorder %s24, 0
      %p99 = por %p97, %p98
      %p100 = scmp.ne.s32.totalorder %s88, %s89
      %p101 = scmp.eq.s32.totalorder %s25, 1
      %p102 = por %p100, %p101
      %p104 = scmp.ne.s32.totalorder %s89, %s103
      %p105 = scmp.eq.s32.totalorder %s25, 0
      %p106 = por %p104, %p105
      %s108 = sadd.s32 %s107, 1
      %p111 = scmp.eq.s32.totalorder %s19, 1
      %p112 = scmp.ne.s32.totalorder %s107, %s109
      %p113 = scmp.eq.s32.totalorder %s19, 0
      %p114 = por %p112, %p113
      %p115 = scmp.ne.s32.totalorder %s107, %s109
      %p116 = scmp.eq.s32.totalorder %s24, 1
      %p117 = por %p115, %p116
      %p118 = scmp.ne.s32.totalorder %s109, %s110
      %p119 = scmp.eq.s32.totalorder %s24, 0
      %p120 = por %p118, %p119
      %p121 = scmp.ne.s32.totalorder %s109, %s110
      %p122 = scmp.eq.s32.totalorder %s25, 1
      %p123 = por %p121, %p122
      %p125 = scmp.ne.s32.totalorder %s110, %s124
      %p126 = scmp.eq.s32.totalorder %s25, 0
      %p127 = por %p125, %p126
      %s129 = sadd.s32 %s128, 1
      %p132 = scmp.eq.s32.totalorder %s19, 1
      %p133 = scmp.ne.s32.totalorder %s128, %s130
      %p134 = scmp.eq.s32.totalorder %s19, 0
      %p135 = por %p133, %p134
      %p136 = scmp.ne.s32.totalorder %s128, %s130
      %p137 = scmp.eq.s32.totalorder %s24, 1
      %p138 = por %p136, %p137
      %p139 = scmp.ne.s32.totalorder %s130, %s131
      %p140 = scmp.eq.s32.totalorder %s24, 0
      %p141 = por %p139, %p140
      %p142 = scmp.ne.s32.totalorder %s130, %s131
      %p143 = scmp.eq.s32.totalorder %s25, 1
      %p144 = por %p142, %p143
      %p146 = scmp.ne.s32.totalorder %s131, %s145
      %p147 = scmp.eq.s32.totalorder %s25, 0
      %p148 = por %p146, %p147
      %s149 = ssub.s32 %s26, %s38
      %s150 = ssub.s32 %s27, %s34
      %s151 = sor.u32 %s149, %s150
      %p152 = scmp.eq.s32.totalorder %s151, 0
      %s154 = sadd.s32 %s153, 1
      %s155 = scalar_select %p152, %s153, %s154
      %p158 = pneg %p152
      %p159 = scmp.eq.s32.totalorder %s19, 1
      %p160 = por %p158, %p159
      %p161 = scmp.ne.s32.totalorder %s153, %s156
      %p162 = scmp.eq.s32.totalorder %s19, 0
      %p163 = por %p161, %p162
      %p164 = scmp.ne.s32.totalorder %s153, %s156
      %p165 = scmp.eq.s32.totalorder %s24, 1
      %p166 = por %p164, %p165
      %p167 = scmp.ne.s32.totalorder %s156, %s157
      %p168 = scmp.eq.s32.totalorder %s24, 0
      %p169 = por %p167, %p168
      %p170 = scmp.ne.s32.totalorder %s156, %s157
      %p171 = scmp.eq.s32.totalorder %s25, 1
      %p172 = por %p170, %p171
      %p174 = scmp.ne.s32.totalorder %s157, %s173
      %p175 = scmp.eq.s32.totalorder %s25, 0
      %p176 = por %p174, %p175
      %s177 = ssub.s32 %s26, %s38
      %s178 = ssub.s32 %s27, %s34
      %s179 = sor.u32 %s177, %s178
      %p180 = scmp.eq.s32.totalorder %s179, 0
      %s182 = sadd.s32 %s181, 1
      %s183 = scalar_select %p180, %s181, %s182
      %p186 = pneg %p180
      %p187 = scmp.eq.s32.totalorder %s19, 1
      %p188 = por %p186, %p187
      %p189 = scmp.ne.s32.totalorder %s181, %s184
      %p190 = scmp.eq.s32.totalorder %s19, 0
      %p191 = por %p189, %p190
      %p192 = scmp.ne.s32.totalorder %s181, %s184
      %p193 = scmp.eq.s32.totalorder %s24, 1
      %p194 = por %p192, %p193
      %p195 = scmp.ne.s32.totalorder %s184, %s185
      %p196 = scmp.eq.s32.totalorder %s24, 0
      %p197 = por %p195, %p196
      %p198 = scmp.ne.s32.totalorder %s184, %s185
      %p199 = scmp.eq.s32.totalorder %s25, 1
      %p200 = por %p198, %p199
      %p202 = scmp.ne.s32.totalorder %s185, %s201
      %p203 = scmp.eq.s32.totalorder %s25, 0
      %p204 = por %p202, %p203
      %p205 = scmp.le.s32.totalorder 1, %s19
      %p206 = scmp.lt.s32.totalorder %s19, 3
      %p207 = pnand %p205, %p206
      %p208 = pneg %p207
      // Predicated region
      $region9: #{tpu_custom_call.1} parent=5 // pred_check
        _
      $region10: #{tpu_custom_call.1} parent=5 // pred_check_branch
        %210 = sbr.rel (%p207) target = $region12
      $region11: #{tpu_custom_call.1} parent=5 // pred_region
        %s211 = ssub.s32 %s19, 1
        // Predicated region
        $region13: #{tpu_custom_call.1} parent=11 // pred_check
          %p212 = pneg %p57
        $region14: #{tpu_custom_call.1} parent=11 // pred_check_branch
          %214 = sbr.rel (%p212) target = $region16
        $region15: #{tpu_custom_call.1} parent=11 // pred_region
          %p215 = scmp.lt.s32.totalorder %s28, 1
          %s216 = scalar_select %p215, %s28, 1
          %s217 = smul.addr %s216, 8
          %s218 = scalar_lea.vmem %s0, %s217
        $region16: #{tpu_custom_call.1} parent=11 // pred_fallthru
          _
        // Predicated region
        $region17: #{tpu_custom_call.1} parent=11 // pred_check
          %p219 = pneg %p78
        $region18: #{tpu_custom_call.1} parent=11 // pred_check_branch
          %221 = sbr.rel (%p219) target = $region20
        $region19: #{tpu_custom_call.1} parent=11 // pred_region
          _
        $region20: #{tpu_custom_call.1} parent=11 // pred_fallthru
          _
        // Predicated region
        $region21: #{tpu_custom_call.1} parent=11 // pred_check
          %p222 = pneg %p99
        $region22: #{tpu_custom_call.1} parent=11 // pred_check_branch
          %224 = sbr.rel (%p222) target = $region24
        $region23: #{tpu_custom_call.1} parent=11 // pred_region
          _
        $region24: #{tpu_custom_call.1} parent=11 // pred_fallthru
          _
        // Predicated region
        $region25: #{tpu_custom_call.1} parent=11 // pred_check
          %p225 = pneg %p120
        $region26: #{tpu_custom_call.1} parent=11 // pred_check_branch
          %227 = sbr.rel (%p225) target = $region28
        $region27: #{tpu_custom_call.1} parent=11 // pred_region
          _
        $region28: #{tpu_custom_call.1} parent=11 // pred_fallthru
          _
        // Predicated region
        $region29: #{tpu_custom_call.1} parent=11 // pred_check
          %p228 = pneg %p141
        $region30: #{tpu_custom_call.1} parent=11 // pred_check_branch
          %230 = sbr.rel (%p228) target = $region32
        $region31: #{tpu_custom_call.1} parent=11 // pred_region
          _
        $region32: #{tpu_custom_call.1} parent=11 // pred_fallthru
          _
      $region12: #{tpu_custom_call.1} parent=5 // pred_fallthru
        _
      %p231 = scmp.lt.s32.totalorder %s19, 2
      // Predicated region
      $region33: #{tpu_custom_call.1} parent=5 // pred_check
        %p232 = pneg %p231
      $region34: #{tpu_custom_call.1} parent=5 // pred_check_branch
        %234 = sbr.rel (%p232) target = $region36
      $region35: #{tpu_custom_call.1} parent=5 // pred_region
        _
      $region36: #{tpu_custom_call.1} parent=5 // pred_fallthru
        _
      %p235 = scmp.le.s32.totalorder 1, %s19
      %p236 = scmp.lt.s32.totalorder %s19, 3
      %p237 = pnand %p235, %p236
      %p238 = pneg %p237
      // Predicated region
      $region37: #{tpu_custom_call.1} parent=5 // pred_check
        _
      $region38: #{tpu_custom_call.1} parent=5 // pred_check_branch
        %240 = sbr.rel (%p237) target = $region40
      $region39: #{tpu_custom_call.1} parent=5 // pred_region
        %s241 = ssub.s32 %s19, 1
        %p242 = scmp.lt.s32.totalorder %s28, 1
        %s243 = scalar_select %p242, %s28, 1
        %s244 = smul.addr %s243, 8
        %s245 = scalar_lea.vmem %s0, %s244
        %p246 = pneg %p57
        %p247 = pneg %p54
        %p248 = pneg %p78
        %p249 = pneg %p75
        %p250 = pneg %p99
        %p251 = pneg %p96
        %p252 = pneg %p120
        %p253 = pneg %p117
        %p254 = pneg %p141
        %p255 = pneg %p138
        %p256 = pneg %p169
        %p257 = pneg %p166
        %s258 = sand.u32 %s156, 1
        %s259 = scalar_lea.sflag [#allocation5], %s258
        %s260 = sand.u32 %s156, 1
        %s261 = smul.addr %s260, 8
        %s262 = scalar_lea.vmem [#allocation4], %s261
        %p263 = pneg %p197
        %p264 = pneg %p194
        %s265 = sand.u32 %s184, 1
        %s266 = scalar_lea.sflag [#allocation7], %s265
        %s267 = sand.u32 %s184, 1
        %s268 = smul.addr %s267, 8
        %s269 = scalar_lea.vmem [#allocation6], %s268
        %p270 = scmp.lt.s32.totalorder %s28, 1
        %s271 = scalar_select %p270, %s28, 1
        %s272 = smul.addr %s271, 8
        %s273 = scalar_lea.vmem %s0, %s272
        %p274 = scmp.eq.s32.totalorder %s29, 0
        // Predicated region
        $region41: #{tpu_custom_call.1} parent=39 // pred_check
          %p275 = pneg %p274
        $region42: #{tpu_custom_call.1} parent=39 // pred_check_branch
          %277 = sbr.rel (%p275) target = $region44
        $region43: #{tpu_custom_call.1} parent=39 // pred_region
          %v278 = vld [vmem:[%s273] sm:$0xff]
          %v279 = vld [vmem:[%s3] sm:$0xff]
          %v280 = vld [vmem:[%s3 + $0x8] sm:$0xff]
          %v281 = vld [vmem:[%s3 + $0x10] sm:$0xff]
          %v282 = vld [vmem:[%s3 + $0x18] sm:$0xff]
          %v283 = vld [vmem:[%s4] sm:$0x1]
          %v285 = vlaneseq
          %v286 = vshrl.u32 %v285, 7
          %v287 = vsub.s32 0, %v286
          %v288 = vrot.slane %v283, %v287
          %vm290 = vcmask 261120
          %v292 = vsel %vm290, %v278, 0
          %294 = vmatprep.subr.mxu0 0.0
          %295 = vmatpush1.msra.mxu0 %v279
          %296 = vmatprep.subr.mxu0 0.0
          %297 = vmatpush1.msra.mxu0 %v280
          %298 = vmatprep.subr.mxu0 0.0
          %299 = vmatpush1.msra.mxu0 %v281
          %300 = vmatprep.subr.mxu0 0.0
          %301 = vmatpush1.msra.mxu0 %v282
          %302 = vmatprep.subr.mxu0 0.0
          %303 = vmatpush1.msra.mxu0 0.0
          %304 = vmatprep.subr.mxu0 0.0
          %305 = vmatpush1.msra.mxu0 0.0
          %306 = vmatprep.subr.mxu0 0.0
          %307 = vmatpush1.msra.mxu0 0.0
          %308 = vmatprep.subr.mxu0 0.0
          %309 = vmatpush1.msra.mxu0 0.0
          %310 = vmatprep.subr.mxu0 0.0
          %311 = vmatpush1.msra.mxu0 0.0
          %312 = vmatprep.subr.mxu0 0.0
          %313 = vmatpush1.msra.mxu0 0.0
          %314 = vmatprep.subr.mxu0 0.0
          %315 = vmatpush1.msra.mxu0 0.0
          %316 = vmatprep.subr.mxu0 0.0
          %317 = vmatpush1.msra.mxu0 0.0
          %318 = vmatprep.subr.mxu0 0.0
          %319 = vmatpush1.msra.mxu0 0.0
          %320 = vmatprep.subr.mxu0 0.0
          %321 = vmatpush1.msra.mxu0 0.0
          %322 = vmatprep.subr.mxu0 0.0
          %323 = vmatpush1.msra.mxu0 0.0
          %324 = vmatprep.subr.mxu0 0.0
          %325 = vmatpush1.msra.mxu0 0.0
          %326 = vmatprep.subr.mxu0 0.0
          %327 = vmatpush1.msra.mxu0 0.0
          %328 = vmatprep.subr.mxu0 0.0
          %329 = vmatpush1.msra.mxu0 0.0
          %330 = vmatprep.subr.mxu0 0.0
          %331 = vmatpush1.msra.mxu0 0.0
          %332 = vmatprep.subr.mxu0 0.0
          %333 = vmatpush1.msra.mxu0 0.0
          %334 = vmatprep.subr.mxu0 0.0
          %335 = vmatpush1.msra.mxu0 0.0
          %336 = vmatprep.subr.mxu0 0.0
          %337 = vmatpush1.msra.mxu0 0.0
          %338 = vmatprep.subr.mxu0 0.0
          %339 = vmatpush1.msra.mxu0 0.0
          %340 = vmatprep.subr.mxu0 0.0
          %341 = vmatpush1.msra.mxu0 0.0
          %342 = vmatprep.subr.mxu0 0.0
          %343 = vmatpush1.msra.mxu0 0.0
          %344 = vmatprep.subr.mxu0 0.0
          %345 = vmatpush1.msra.mxu0 0.0
          %346 = vmatprep.subr.mxu0 0.0
          %347 = vmatpush1.msra.mxu0 0.0
          %348 = vmatprep.subr.mxu0 0.0
          %349 = vmatpush1.msra.mxu0 0.0
          %350 = vmatprep.subr.mxu0 0.0
          %351 = vmatpush1.msra.mxu0 0.0
          %352 = vmatprep.subr.mxu0 0.0
          %353 = vmatpush1.msra.mxu0 0.0
          %354 = vmatprep.subr.mxu0 0.0
          %355 = vmatpush1.msra.mxu0 0.0
          %356 = vmatprep.subr.mxu0 0.0
          %357 = vmatpush1.msra.mxu0 0.0
          %358 = vmatprep.mubr.f32.mxu0 0.0
          %359 = vmatmul.mubr.f32.gmra.mrb[0].mxu0 %v292
          %v360 = vpop.f32.mrb[0].mxu0
          %v361 = vadd.f32 %v288, %v360
          %v362 = vpop.f32.mrb[0].mxu0
          %363 = vdwg.mxu0
          %vm364 = vcmask 130048
          %365 = vst.msk [vmem:[#allocation2] sm:$0xff] %vm364, %v361
          %367 = vrot.lane.b32.xlu0 %v361, 112
          %v368 = vpop.permute.xlu0 %367
          %370 = vst.msk [vmem:[#allocation3] sm:$0xff] %vm364, %v368
        $region44: #{tpu_custom_call.1} parent=39 // pred_fallthru
          _
        %s371 = smul.u32 %s29, 8
        %s372 = scalar_lea.vmem %s273, %s371
        %v373 = vld [vmem:[%s372] sm:$0xff]
        %v374 = vld [vmem:[%s1] sm:$0xff]
        %v375 = vld [vmem:[%s1 + $0x8] sm:$0xff]
        %v376 = vld [vmem:[%s1 + $0x10] sm:$0xff]
        %v377 = vld [vmem:[%s1 + $0x18] sm:$0xff]
        %v378 = vld [vmem:[%s2] sm:$0x1]
        %v380 = vlaneseq
        %v381 = vshrl.u32 %v380, 7
        %v382 = vsub.s32 0, %v381
        %v383 = vrot.slane %v378, %v382
        %vm385 = vcmask 261120
        %v387 = vsel %vm385, %v373, 0
        %389 = vmatprep.subr.mxu0 0.0
        %390 = vmatpush1.msra.mxu0 %v374
        %391 = vmatprep.subr.mxu0 0.0
        %392 = vmatpush1.msra.mxu0 %v375
        %393 = vmatprep.subr.mxu0 0.0
        %394 = vmatpush1.msra.mxu0 %v376
        %395 = vmatprep.subr.mxu0 0.0
        %396 = vmatpush1.msra.mxu0 %v377
        %397 = vmatprep.subr.mxu0 0.0
        %398 = vmatpush1.msra.mxu0 0.0
        %399 = vmatprep.subr.mxu0 0.0
        %400 = vmatpush1.msra.mxu0 0.0
        %401 = vmatprep.subr.mxu0 0.0
        %402 = vmatpush1.msra.mxu0 0.0
        %403 = vmatprep.subr.mxu0 0.0
        %404 = vmatpush1.msra.mxu0 0.0
        %405 = vmatprep.subr.mxu0 0.0
        %406 = vmatpush1.msra.mxu0 0.0
        %407 = vmatprep.subr.mxu0 0.0
        %408 = vmatpush1.msra.mxu0 0.0
        %409 = vmatprep.subr.mxu0 0.0
        %410 = vmatpush1.msra.mxu0 0.0
        %411 = vmatprep.subr.mxu0 0.0
        %412 = vmatpush1.msra.mxu0 0.0
        %413 = vmatprep.subr.mxu0 0.0
        %414 = vmatpush1.msra.mxu0 0.0
        %415 = vmatprep.subr.mxu0 0.0
        %416 = vmatpush1.msra.mxu0 0.0
        %417 = vmatprep.subr.mxu0 0.0
        %418 = vmatpush1.msra.mxu0 0.0
        %419 = vmatprep.subr.mxu0 0.0
        %420 = vmatpush1.msra.mxu0 0.0
        %421 = vmatprep.subr.mxu0 0.0
        %422 = vmatpush1.msra.mxu0 0.0
        %423 = vmatprep.subr.mxu0 0.0
        %424 = vmatpush1.msra.mxu0 0.0
        %425 = vmatprep.subr.mxu0 0.0
        %426 = vmatpush1.msra.mxu0 0.0
        %427 = vmatprep.subr.mxu0 0.0
        %428 = vmatpush1.msra.mxu0 0.0
        %429 = vmatprep.subr.mxu0 0.0
        %430 = vmatpush1.msra.mxu0 0.0
        %431 = vmatprep.subr.mxu0 0.0
        %432 = vmatpush1.msra.mxu0 0.0
        %433 = vmatprep.subr.mxu0 0.0
        %434 = vmatpush1.msra.mxu0 0.0
        %435 = vmatprep.subr.mxu0 0.0
        %436 = vmatpush1.msra.mxu0 0.0
        %437 = vmatprep.subr.mxu0 0.0
        %438 = vmatpush1.msra.mxu0 0.0
        %439 = vmatprep.subr.mxu0 0.0
        %440 = vmatpush1.msra.mxu0 0.0
        %441 = vmatprep.subr.mxu0 0.0
        %442 = vmatpush1.msra.mxu0 0.0
        %443 = vmatprep.subr.mxu0 0.0
        %444 = vmatpush1.msra.mxu0 0.0
        %445 = vmatprep.subr.mxu0 0.0
        %446 = vmatpush1.msra.mxu0 0.0
        %447 = vmatprep.subr.mxu0 0.0
        %448 = vmatpush1.msra.mxu0 0.0
        %449 = vmatprep.subr.mxu0 0.0
        %450 = vmatpush1.msra.mxu0 0.0
        %451 = vmatprep.subr.mxu0 0.0
        %452 = vmatpush1.msra.mxu0 0.0
        %453 = vmatprep.mubr.f32.mxu0 0.0
        %454 = vmatmul.mubr.f32.gmra.mrb[0].mxu0 %v387
        %v455 = vpop.f32.mrb[0].mxu0
        %v456 = vadd.f32 %v383, %v455
        %v457 = vpop.f32.mrb[0].mxu0
        %458 = vdwg.mxu0
        %v459 = vld [vmem:[#allocation2] sm:$0xff]
        %vm460 = vcmask 130048
        %v462 = vsel %vm460, %v456, 0
        %v465 = vsel %vm460, %v459, 0
        %467 = vmatprep.subr.mxu0 0.0
        %468 = vmatpush1.xpose.msra.mxu0 %v465
        %469 = vmatprep.subr.mxu0 0.0
        %470 = vmatpush1.xpose.msra.mxu0 0.0
        %471 = vmatprep.subr.mxu0 0.0
        %472 = vmatpush1.xpose.msra.mxu0 0.0
        %473 = vmatprep.subr.mxu0 0.0
        %474 = vmatpush1.xpose.msra.mxu0 0.0
        %475 = vmatprep.subr.mxu0 0.0
        %476 = vmatpush1.xpose.msra.mxu0 0.0
        %477 = vmatprep.subr.mxu0 0.0
        %478 = vmatpush1.xpose.msra.mxu0 0.0
        %479 = vmatprep.subr.mxu0 0.0
        %480 = vmatpush1.xpose.msra.mxu0 0.0
        %481 = vmatprep.subr.mxu0 0.0
        %482 = vmatpush1.xpose.msra.mxu0 0.0
        %483 = vmatprep.subr.mxu0 0.0
        %484 = vmatpush1.xpose.msra.mxu0 0.0
        %485 = vmatprep.subr.mxu0 0.0
        %486 = vmatpush1.xpose.msra.mxu0 0.0
        %487 = vmatprep.subr.mxu0 0.0
        %488 = vmatpush1.xpose.msra.mxu0 0.0
        %489 = vmatprep.subr.mxu0 0.0
        %490 = vmatpush1.xpose.msra.mxu0 0.0
        %491 = vmatprep.subr.mxu0 0.0
        %492 = vmatpush1.xpose.msra.mxu0 0.0
        %493 = vmatprep.subr.mxu0 0.0
        %494 = vmatpush1.xpose.msra.mxu0 0.0
        %495 = vmatprep.subr.mxu0 0.0
        %496 = vmatpush1.xpose.msra.mxu0 0.0
        %497 = vmatprep.subr.mxu0 0.0
        %498 = vmatpush1.xpose.msra.mxu0 0.0
        %499 = vmatprep.subr.mxu0 0.0
        %500 = vmatpush1.xpose.msra.mxu0 0.0
        %501 = vmatprep.subr.mxu0 0.0
        %502 = vmatpush1.xpose.msra.mxu0 0.0
        %503 = vmatprep.subr.mxu0 0.0
        %504 = vmatpush1.xpose.msra.mxu0 0.0
        %505 = vmatprep.subr.mxu0 0.0
        %506 = vmatpush1.xpose.msra.mxu0 0.0
        %507 = vmatprep.subr.mxu0 0.0
        %508 = vmatpush1.xpose.msra.mxu0 0.0
        %509 = vmatprep.subr.mxu0 0.0
        %510 = vmatpush1.xpose.msra.mxu0 0.0
        %511 = vmatprep.subr.mxu0 0.0
        %512 = vmatpush1.xpose.msra.mxu0 0.0
        %513 = vmatprep.subr.mxu0 0.0
        %514 = vmatpush1.xpose.msra.mxu0 0.0
        %515 = vmatprep.subr.mxu0 0.0
        %516 = vmatpush1.xpose.msra.mxu0 0.0
        %517 = vmatprep.subr.mxu0 0.0
        %518 = vmatpush1.xpose.msra.mxu0 0.0
        %519 = vmatprep.subr.mxu0 0.0
        %520 = vmatpush1.xpose.msra.mxu0 0.0
        %521 = vmatprep.subr.mxu0 0.0
        %522 = vmatpush1.xpose.msra.mxu0 0.0
        %523 = vmatprep.subr.mxu0 0.0
        %524 = vmatpush1.xpose.msra.mxu0 0.0
        %525 = vmatprep.subr.mxu0 0.0
        %526 = vmatpush1.xpose.msra.mxu0 0.0
        %527 = vmatprep.subr.mxu0 0.0
        %528 = vmatpush1.xpose.msra.mxu0 0.0
        %529 = vmatprep.subr.mxu0 0.0
        %530 = vmatpush1.xpose.msra.mxu0 0.0
        %531 = vmatprep.mubr.f32.mxu0 0.0
        %532 = vmatmul.mubr.f32.gmra.mrb[0].mxu0 %v462
        %v533 = vpop.f32.mrb[0].mxu0
        %v534 = vadd.f32 0.0, %v533
        %v535 = vpop.f32.mrb[0].mxu0
        %536 = vdwg.mxu0
        %vm537 = vcmask 64512
        %v538 = vsel %vm537, %v534, -inf
        %539 = vmax.xlane.f32.xlu0 %v538
        %v540 = vpop.xlane.xlu0 %539
        %v541 = vsub.f32 %v534, %v540
        %v542 = vmul.f32 %v541, 1.442695
        %v543 = vpow.pop %v542
        %v544 = vsel %vm537, %v543, 0.0
        %545 = vadd.xlane.f32.xlu0 %v544
        %v546 = vpop.xlane.xlu0 %545
        %v547 = vrcp.pop %v546
        %v548 = vmul.f32 %v543, %v547
        %v549 = vld [vmem:[#allocation3] sm:$0xff]
        %v551 = vsel %vm537, %v548, 0
        %553 = vmatprep.subr.mxu0 0.0
        %554 = vmatpush1.msra.mxu0 %v549
        %555 = vmatprep.subr.mxu0 0.0
        %556 = vmatpush1.msra.mxu0 0.0
        %557 = vmatprep.subr.mxu0 0.0
        %558 = vmatpush1.msra.mxu0 0.0
        %559 = vmatprep.subr.mxu0 0.0
        %560 = vmatpush1.msra.mxu0 0.0
        %561 = vmatprep.subr.mxu0 0.0
        %562 = vmatpush1.msra.mxu0 0.0
        %563 = vmatprep.subr.mxu0 0.0
        %564 = vmatpush1.msra.mxu0 0.0
        %565 = vmatprep.subr.mxu0 0.0
        %566 = vmatpush1.msra.mxu0 0.0
        %567 = vmatprep.subr.mxu0 0.0
        %568 = vmatpush1.msra.mxu0 0.0
        %569 = vmatprep.subr.mxu0 0.0
        %570 = vmatpush1.msra.mxu0 0.0
        %571 = vmatprep.subr.mxu0 0.0
        %572 = vmatpush1.msra.mxu0 0.0
        %573 = vmatprep.subr.mxu0 0.0
        %574 = vmatpush1.msra.mxu0 0.0
        %575 = vmatprep.subr.mxu0 0.0
        %576 = vmatpush1.msra.mxu0 0.0
        %577 = vmatprep.subr.mxu0 0.0
        %578 = vmatpush1.msra.mxu0 0.0
        %579 = vmatprep.subr.mxu0 0.0
        %580 = vmatpush1.msra.mxu0 0.0
        %581 = vmatprep.subr.mxu0 0.0
        %582 = vmatpush1.msra.mxu0 0.0
        %583 = vmatprep.subr.mxu0 0.0
        %584 = vmatpush1.msra.mxu0 0.0
        %585 = vmatprep.subr.mxu0 0.0
        %586 = vmatpush1.msra.mxu0 0.0
        %587 = vmatprep.subr.mxu0 0.0
        %588 = vmatpush1.msra.mxu0 0.0
        %589 = vmatprep.subr.mxu0 0.0
        %590 = vmatpush1.msra.mxu0 0.0
        %591 = vmatprep.subr.mxu0 0.0
        %592 = vmatpush1.msra.mxu0 0.0
        %593 = vmatprep.subr.mxu0 0.0
        %594 = vmatpush1.msra.mxu0 0.0
        %595 = vmatprep.subr.mxu0 0.0
        %596 = vmatpush1.msra.mxu0 0.0
        %597 = vmatprep.subr.mxu0 0.0
        %598 = vmatpush1.msra.mxu0 0.0
        %599 = vmatprep.subr.mxu0 0.0
        %600 = vmatpush1.msra.mxu0 0.0
        %601 = vmatprep.subr.mxu0 0.0
        %602 = vmatpush1.msra.mxu0 0.0
        %603 = vmatprep.subr.mxu0 0.0
        %604 = vmatpush1.msra.mxu0 0.0
        %605 = vmatprep.subr.mxu0 0.0
        %606 = vmatpush1.msra.mxu0 0.0
        %607 = vmatprep.subr.mxu0 0.0
        %608 = vmatpush1.msra.mxu0 0.0
        %609 = vmatprep.subr.mxu0 0.0
        %610 = vmatpush1.msra.mxu0 0.0
        %611 = vmatprep.subr.mxu0 0.0
        %612 = vmatpush1.msra.mxu0 0.0
        %613 = vmatprep.subr.mxu0 0.0
        %614 = vmatpush1.msra.mxu0 0.0
        %615 = vmatprep.subr.mxu0 0.0
        %616 = vmatpush1.msra.mxu0 0.0
        %617 = vmatprep.mubr.f32.mxu0 0.0
        %618 = vmatmul.mubr.f32.gmra.mrb[0].mxu0 %v551
        %v619 = vpop.f32.mrb[0].mxu0
        %v620 = vadd.f32 0.0, %v619
        %v621 = vpop.f32.mrb[0].mxu0
        %622 = vdwg.mxu0
        %623 = vst.msk [vmem:[%s262] sm:$0xff] %vm537, %v548
        %624 = vst.msk [vmem:[%s269] sm:$0xff] %vm460, %v620
        %s625 = sand.u32 %s156, 1
        %s626 = scalar_lea.sflag [#allocation5], %s625
        %s627 = sand.u32 %s156, 1
        %s628 = smul.addr %s627, 8
        %s629 = scalar_lea.vmem [#allocation4], %s628
        %s630 = sand.u32 %s184, 1
        %s631 = scalar_lea.sflag [#allocation7], %s630
        %s632 = sand.u32 %s184, 1
        %s633 = smul.addr %s632, 8
        %s634 = scalar_lea.vmem [#allocation6], %s633
        // Predicated region
        $region45: #{tpu_custom_call.1} parent=39 // pred_check
          %p635 = pneg %p166
        $region46: #{tpu_custom_call.1} parent=39 // pred_check_branch
          %637 = sbr.rel (%p635) target = $region48
        $region47: #{tpu_custom_call.1} parent=39 // pred_region
          %s639 = ssub.s32 128, 128
          %640 = vsyncadd %s626, %s639
          %s641 = sadd.s32 %s29, %s28
          %s642 = smul.addr %s641, 128
          %s643 = scalar_lea.hbm %s5, %s642
          %s645 = sshll.u32 %s629, 4
          %s646 = int_to_ptr.vmem [resolvable:$true] %s645
          %648 = dma.vmem_to_hbm [thread:$0]  %s646, 128, %s643, %s626
        $region48: #{tpu_custom_call.1} parent=39 // pred_fallthru
          _
        // Predicated region
        $region49: #{tpu_custom_call.1} parent=39 // pred_check
          %p649 = pneg %p194
        $region50: #{tpu_custom_call.1} parent=39 // pred_check_branch
          %651 = sbr.rel (%p649) target = $region52
        $region51: #{tpu_custom_call.1} parent=39 // pred_region
          %s653 = ssub.s32 128, 128
          %654 = vsyncadd %s631, %s653
          %s655 = sadd.s32 %s29, %s28
          %s656 = smul.addr %s655, 128
          %s657 = scalar_lea.hbm %s6, %s656
          %s659 = sshll.u32 %s634, 4
          %s660 = int_to_ptr.vmem [resolvable:$true] %s659
          %662 = dma.vmem_to_hbm [thread:$0]  %s660, 128, %s657, %s631
        $region52: #{tpu_custom_call.1} parent=39 // pred_fallthru
          _
      $region40: #{tpu_custom_call.1} parent=5 // pred_fallthru
        _
      %p663 = scmp.le.s32.totalorder 2, %s19
      // Predicated region
      $region53: #{tpu_custom_call.1} parent=5 // pred_check
        %p664 = pneg %p663
      $region54: #{tpu_custom_call.1} parent=5 // pred_check_branch
        %666 = sbr.rel (%p664) target = $region56
      $region55: #{tpu_custom_call.1} parent=5 // pred_region
        %s667 = ssub.s32 %s19, 2
        // Predicated region
        $region57: #{tpu_custom_call.1} parent=55 // pred_check
          %p668 = pneg %p172
        $region58: #{tpu_custom_call.1} parent=55 // pred_check_branch
          %670 = sbr.rel (%p668) target = $region60
        $region59: #{tpu_custom_call.1} parent=55 // pred_region
          %s671 = sand.u32 %s157, 1
          %s672 = scalar_lea.sflag [#allocation5], %s671
          %s673 = sand.u32 %s157, 1
          %s674 = smul.addr %s673, 8
          %s675 = scalar_lea.vmem [#allocation4], %s674
          %676 = dma.done %s672, 128
        $region60: #{tpu_custom_call.1} parent=55 // pred_fallthru
          _
        // Predicated region
        $region61: #{tpu_custom_call.1} parent=55 // pred_check
          %p677 = pneg %p200
        $region62: #{tpu_custom_call.1} parent=55 // pred_check_branch
          %679 = sbr.rel (%p677) target = $region64
        $region63: #{tpu_custom_call.1} parent=55 // pred_region
          %s680 = sand.u32 %s185, 1
          %s681 = scalar_lea.sflag [#allocation7], %s680
          %s682 = sand.u32 %s185, 1
          %s683 = smul.addr %s682, 8
          %s684 = scalar_lea.vmem [#allocation6], %s683
          %685 = dma.done %s681, 128
        $region64: #{tpu_custom_call.1} parent=55 // pred_fallthru
          _
      $region56: #{tpu_custom_call.1} parent=5 // pred_fallthru
        _
    $region6: #{tpu_custom_call.1} parent=1 // loop_footer
      %s23 = sadd.s32 1, %s19
    $region7: #{tpu_custom_call.1} parent=1 // loop_footer_branch
      %18 = sbr.rel target = $region3
    $region8: #{tpu_custom_call.1} parent=1 // loop_exit
      _
    %686 = vsyncpa [#allocation5], 1
    %s687 = scalar_lea.sflag [#allocation5], 1
    %688 = vsyncpa %s687, 1
    %689 = vsyncpa [#allocation7], 1
    %s690 = scalar_lea.sflag [#allocation7], 1
    %691 = vsyncpa %s690, 1

</llo_original>
